<compile_context>
chip_gen: v7x
topology: tpu7x:2x2x1
jax: 0.10.0
libtpu: 0.0.40
codegen_flags: <defaults>
</compile_context>

<pallas_src>
import functools

import jax
import jax.numpy as jnp
from jax.experimental import pallas as pl
from jax.experimental.pallas import tpu as pltpu

_LANES = 128
_H1, _H2, _OUT = 100, 50, 2


def _round_up(n, m):
    return (n + m - 1) // m * m


# --------------------------------------------------------------------------
# Kernel
# --------------------------------------------------------------------------
def attack_mlp_kernel(x_ref, w_ref, o_ref, *, c_pad, off_b1, off_w2, off_b2,
                      off_w3, off_b3, hid_pad):
    """One batch tile: 3 matmuls (f32 accum) + relus + 2-class softmax."""
    cdt = w_ref.dtype                     # compute dtype (bf16 or f32)
    x = x_ref[...]                        # (TB, c_pad)

    # fc1 + relu  (outputs lane-padded to 128; padded lanes stay exactly 0)
    h = jnp.dot(x, w_ref[0:c_pad, :], preferred_element_type=jnp.float32)
    h = jnp.maximum(h + w_ref[off_b1:off_b1 + 1, :].astype(jnp.float32), 0.0)

    # fc2 + relu
    h = jnp.dot(h.astype(cdt), w_ref[off_w2:off_w2 + hid_pad, :],
                preferred_element_type=jnp.float32)
    h = jnp.maximum(h + w_ref[off_b2:off_b2 + 1, :].astype(jnp.float32), 0.0)

    # fc3 (only lanes 0 and 1 are meaningful)
    logits = jnp.dot(h.astype(cdt), w_ref[off_w3:off_w3 + hid_pad, :],
                     preferred_element_type=jnp.float32)
    logits = logits + w_ref[off_b3:off_b3 + 1, :].astype(jnp.float32)

    # softmax(dim=1) over the 2 classes, done elementwise between the two
    # logit lanes (no XLU cross-lane reductions).  Exactly the stable softmax.
    l0 = logits[:, 0:1]
    l1 = logits[:, 1:2]
    m = jnp.maximum(l0, l1)
    e0 = jnp.exp(l0 - m)
    e1 = jnp.exp(l1 - m)
    inv = 1.0 / (e0 + e1)
    o_ref[...] = jnp.concatenate([e0 * inv, e1 * inv],
                                 axis=-1).astype(o_ref.dtype)


# --------------------------------------------------------------------------
# Weight packing: one (296, 128) slab, 8-row-aligned segments, zero padded.
# --------------------------------------------------------------------------
def pack_params(params, num_classes, compute_dtype):
    c_pad = _round_up(num_classes, 8)
    hid_pad = _LANES                       # hidden activations live in 128 lanes
    off_w1 = 0
    off_b1 = off_w1 + c_pad
    off_w2 = off_b1 + 8
    off_b2 = off_w2 + hid_pad
    off_w3 = off_b2 + 8
    off_b3 = off_w3 + hid_pad
    rows = off_b3 + 8

    slab = jnp.zeros((rows, _LANES), jnp.float32)
    slab = slab.at[off_w1:off_w1 + num_classes, 0:_H1].set(params["w1"])
    slab = slab.at[off_b1, 0:_H1].set(params["b1"].reshape(-1))
    slab = slab.at[off_w2:off_w2 + _H1, 0:_H2].set(params["w2"])
    slab = slab.at[off_b2, 0:_H2].set(params["b2"].reshape(-1))
    slab = slab.at[off_w3:off_w3 + _H2, 0:_OUT].set(params["w3"])
    slab = slab.at[off_b3, 0:_OUT].set(params["b3"].reshape(-1))

    offsets = dict(c_pad=c_pad, off_b1=off_b1, off_w2=off_w2, off_b2=off_b2,
                   off_w3=off_w3, off_b3=off_b3, hid_pad=hid_pad)
    return slab.astype(compute_dtype), offsets


# --------------------------------------------------------------------------
# Wrapper
# --------------------------------------------------------------------------
def attack_model_forward(x, params, *, block_b=1024,
                         compute_dtype=jnp.bfloat16):
    """x: (B, num_classes).  Returns (B, 2) f32 class probabilities."""
    B, C = x.shape
    slab, off = pack_params(params, C, compute_dtype)
    c_pad = off["c_pad"]

    # Batch tile: multiple of 8, clamped for tiny batches.
    tb = min(_round_up(block_b, 8), _round_up(B, 8))
    b_pad = _round_up(B, tb)

    # Pad features to c_pad and batch to a tile multiple (zero rows are
    # harmless: rows are independent and get sliced off below).
    xp = jnp.zeros((b_pad, c_pad), compute_dtype)
    xp = xp.at[:B, :C].set(x.astype(compute_dtype))

    kernel = functools.partial(attack_mlp_kernel, **off)

    out = pl.pallas_call(
        kernel,
        out_shape=jax.ShapeDtypeStruct((b_pad, _OUT), jnp.float32),
        grid=(b_pad // tb,),
        in_specs=[
            pl.BlockSpec((tb, c_pad), lambda i: (i, 0)),      # x: per-tile
            pl.BlockSpec(slab.shape, lambda i: (0, 0)),       # weights: resident
        ],
        out_specs=pl.BlockSpec((tb, _OUT), lambda i: (i, 0)),
        compiler_params=pltpu.CompilerParams(
            dimension_semantics=("parallel",)),
    )(xp, slab)

    return out[:B]


# --------------------------------------------------------------------------
# Init + pure-JAX reference
# --------------------------------------------------------------------------
def init_params(key, num_classes):
    """Weights stored pre-transposed as (in, out) so the kernel does x @ W + b."""
    ks = jax.random.split(key, 6)

    def lin(kw, kb, fan_in, fan_out):
        bound = 1.0 / jnp.sqrt(fan_in)
        w = jax.random.uniform(kw, (fan_in, fan_out), jnp.float32, -bound, bound)
        b = jax.random.uniform(kb, (1, fan_out), jnp.float32, -bound, bound)
        return w, b

    w1, b1 = lin(ks[0], ks[1], num_classes, _H1)
    w2, b2 = lin(ks[2], ks[3], _H1, _H2)
    w3, b3 = lin(ks[4], ks[5], _H2, _OUT)
    return {"w1": w1, "b1": b1, "w2": w2, "b2": b2, "w3": w3, "b3": b3}


def reference_forward(x, p):
    h = jnp.maximum(x @ p["w1"] + p["b1"], 0.0)
    h = jnp.maximum(h @ p["w2"] + p["b2"], 0.0)
    logits = h @ p["w3"] + p["b3"]
    return jax.nn.softmax(logits, axis=1)


# --------------------------------------------------------------------------
if __name__ == "__main__":
    key = jax.random.PRNGKey(0)
    k_x, k_p, k_x2 = jax.random.split(key, 3)

    batch = 8
    num_classes = 10  # `dataset.num_classes`

    # Input resembles a vector of class posteriors (what an MIA attack sees).
    x = jax.nn.softmax(
        jax.random.normal(k_x, (batch, num_classes), jnp.float32), axis=1)
    params = init_params(k_p, num_classes)
    ref = reference_forward(x, params)

    # 1) default bf16-MXU path, tiny batch (single grid step).
    out = attack_model_forward(x, params)
    out = jax.block_until_ready(out)
    assert out.shape == (batch, 2), out.shape
    assert jnp.allclose(out, ref, atol=3e-2, rtol=3e-2), (
        f"bf16 max abs err {jnp.max(jnp.abs(out - ref))}")
    assert jnp.allclose(jnp.sum(out, axis=1), 1.0, atol=1e-3)

    # 2) f32 path, tight tolerance.
    out_f32 = attack_model_forward(x, params, compute_dtype=jnp.float32)
    out_f32 = jax.block_until_ready(out_f32)
    assert jnp.allclose(out_f32, ref, atol=1e-5, rtol=1e-5), (
        f"f32 max abs err {jnp.max(jnp.abs(out_f32 - ref))}")

    # 3) batched path exercising the grid + ragged-batch padding.
    x_big = jax.nn.softmax(
        jax.random.normal(k_x2, (1000, num_classes), jnp.float32), axis=1)
    ref_big = reference_forward(x_big, params)
    out_big = attack_model_forward(x_big, params, block_b=256)
    out_big = jax.block_until_ready(out_big)
    assert out_big.shape == (1000, 2)
    assert jnp.allclose(out_big, ref_big, atol=3e-2, rtol=3e-2), (
        f"batched max abs err {jnp.max(jnp.abs(out_big - ref_big))}")
    assert jnp.allclose(jnp.sum(out_big, axis=1), 1.0, atol=1e-3)

    print("KERNEL_OK")
</pallas_src>

<mosaic_0001>
module attributes {stable_mosaic.version = 11 : i64} {
  func.func @attack_mlp_kernel(%arg0: i32, %arg1: memref<8x16xbf16, #tpu.memory_space<vmem>>, %arg2: memref<296x128xbf16, #tpu.memory_space<vmem>>, %arg3: memref<8x2xf32, #tpu.memory_space<vmem>>) attributes {dimension_semantics = [#tpu.dimension_semantics<parallel>], iteration_bounds = array<i64: 1>, scalar_prefetch = 0 : i64, scratch_operands = 0 : i64, tpu.core_type = #tpu.core_type<tc>, window_params = [{transform_indices = @transform_0, window_bounds = array<i64: 8, 16>}, {pipeline_mode = #tpu.pipeline_mode<synchronous>, transform_indices = @transform_1, window_bounds = array<i64: 296, 128>}, {transform_indices = @transform_2, window_bounds = array<i64: 8, 2>}]} {
    %c0 = arith.constant 0 : index
    %c0_0 = arith.constant 0 : index
    %0 = vector.load %arg1[%c0, %c0_0] : memref<8x16xbf16, #tpu.memory_space<vmem>>, vector<8x16xbf16>
    %c0_1 = arith.constant 0 : index
    %c0_2 = arith.constant 0 : index
    %1 = vector.load %arg2[%c0_1, %c0_2] : memref<296x128xbf16, #tpu.memory_space<vmem>>, vector<16x128xbf16>
    %cst = arith.constant dense<0.000000e+00> : vector<8x128xf32>
    %2 = tpu.matmul %0, %1, %cst {dimension_numbers = #tpu.dot_dimension_numbers<[1], [0], [0], [1], [0, 0, 1, 1], [], []>} : vector<8x16xbf16>, vector<16x128xbf16>, vector<8x128xf32> -> vector<8x128xf32>
    %c16 = arith.constant 16 : index
    %c0_3 = arith.constant 0 : index
    %3 = vector.load %arg2[%c16, %c0_3] : memref<296x128xbf16, #tpu.memory_space<vmem>>, vector<1x128xbf16>
    %4 = arith.extf %3 : vector<1x128xbf16> to vector<1x128xf32>
    %5 = vector.broadcast %4 : vector<1x128xf32> to vector<8x128xf32>
    %6 = arith.addf %2, %5 : vector<8x128xf32>
    %cst_4 = arith.constant 0.000000e+00 : f32
    %7 = vector.broadcast %cst_4 : f32 to vector<8x128xf32>
    %8 = arith.maximumf %6, %7 : vector<8x128xf32>
    %9 = arith.truncf %8 : vector<8x128xf32> to vector<8x128xbf16>
    %c24 = arith.constant 24 : index
    %c0_5 = arith.constant 0 : index
    %10 = vector.load %arg2[%c24, %c0_5] : memref<296x128xbf16, #tpu.memory_space<vmem>>, vector<128x128xbf16>
    %cst_6 = arith.constant dense<0.000000e+00> : vector<8x128xf32>
    %11 = tpu.matmul %9, %10, %cst_6 {dimension_numbers = #tpu.dot_dimension_numbers<[1], [0], [0], [1], [0, 0, 1, 1], [], []>} : vector<8x128xbf16>, vector<128x128xbf16>, vector<8x128xf32> -> vector<8x128xf32>
    %c152 = arith.constant 152 : index
    %c0_7 = arith.constant 0 : index
    %12 = vector.load %arg2[%c152, %c0_7] : memref<296x128xbf16, #tpu.memory_space<vmem>>, vector<1x128xbf16>
    %13 = arith.extf %12 : vector<1x128xbf16> to vector<1x128xf32>
    %14 = vector.broadcast %13 : vector<1x128xf32> to vector<8x128xf32>
    %15 = arith.addf %11, %14 : vector<8x128xf32>
    %cst_8 = arith.constant 0.000000e+00 : f32
    %16 = vector.broadcast %cst_8 : f32 to vector<8x128xf32>
    %17 = arith.maximumf %15, %16 : vector<8x128xf32>
    %18 = arith.truncf %17 : vector<8x128xf32> to vector<8x128xbf16>
    %c160 = arith.constant 160 : index
    %c0_9 = arith.constant 0 : index
    %19 = vector.load %arg2[%c160, %c0_9] : memref<296x128xbf16, #tpu.memory_space<vmem>>, vector<128x128xbf16>
    %cst_10 = arith.constant dense<0.000000e+00> : vector<8x128xf32>
    %20 = tpu.matmul %18, %19, %cst_10 {dimension_numbers = #tpu.dot_dimension_numbers<[1], [0], [0], [1], [0, 0, 1, 1], [], []>} : vector<8x128xbf16>, vector<128x128xbf16>, vector<8x128xf32> -> vector<8x128xf32>
    %c288 = arith.constant 288 : index
    %c0_11 = arith.constant 0 : index
    %21 = vector.load %arg2[%c288, %c0_11] : memref<296x128xbf16, #tpu.memory_space<vmem>>, vector<1x128xbf16>
    %22 = arith.extf %21 : vector<1x128xbf16> to vector<1x128xf32>
    %23 = vector.broadcast %22 : vector<1x128xf32> to vector<8x128xf32>
    %24 = arith.addf %20, %23 : vector<8x128xf32>
    %25 = vector.extract_strided_slice %24 {offsets = [0, 0], sizes = [8, 1], strides = [1, 1]} : vector<8x128xf32> to vector<8x1xf32>
    %26 = vector.extract_strided_slice %24 {offsets = [0, 1], sizes = [8, 1], strides = [1, 1]} : vector<8x128xf32> to vector<8x1xf32>
    %27 = arith.maximumf %25, %26 : vector<8x1xf32>
    %28 = arith.subf %25, %27 : vector<8x1xf32>
    %29 = math.exp %28 : vector<8x1xf32>
    %30 = arith.subf %26, %27 : vector<8x1xf32>
    %31 = math.exp %30 : vector<8x1xf32>
    %32 = arith.addf %29, %31 : vector<8x1xf32>
    %cst_12 = arith.constant 1.000000e+00 : f32
    %33 = vector.broadcast %cst_12 : f32 to vector<8x1xf32>
    %34 = arith.divf %33, %32 : vector<8x1xf32>
    %35 = arith.mulf %29, %34 : vector<8x1xf32>
    %36 = arith.mulf %31, %34 : vector<8x1xf32>
    %37 = tpu.concatenate %35, %36 in 1 : vector<8x1xf32>, vector<8x1xf32> -> vector<8x2xf32>
    %c0_13 = arith.constant 0 : index
    %c0_14 = arith.constant 0 : index
    %38 = vector.load %arg3[%c0_13, %c0_14] : memref<8x2xf32, #tpu.memory_space<vmem>>, vector<8x2xf32>
    tpu.vector_store %arg3[%c0_13, %c0_14], %37 {strides = array<i32>} : memref<8x2xf32, #tpu.memory_space<vmem>>, vector<8x2xf32>,
    return
  }
  func.func @transform_0(%arg0: i32) -> (i32, i32) {
    %c0_i32 = arith.constant 0 : i32
    %c0_i32_0 = arith.constant 0 : i32
    return %arg0, %c0_i32 : i32, i32
  }
  func.func @transform_1(%arg0: i32) -> (i32, i32) {
    %c0_i32 = arith.constant 0 : i32
    %c0_i32_0 = arith.constant 0 : i32
    %c0_i32_1 = arith.constant 0 : i32
    return %c0_i32, %c0_i32_0 : i32, i32
  }
  func.func @transform_2(%arg0: i32) -> (i32, i32) {
    %c0_i32 = arith.constant 0 : i32
    %c0_i32_0 = arith.constant 0 : i32
    return %arg0, %c0_i32 : i32, i32
  }
}

</mosaic_0001>

<llo_original>
// kernel: tpu_custom_call.1
$region0: #{tpu_custom_call.1}
  #allocation0 [shape = 'u32[]', space=smem, size = 0x4, offset = 0x4, fixed_abs, tag = 'smem constant byte address 0x4 - core index']
  #allocation1 [shape = 'u32[144,128]{1,0:T(1,128)}', space=vmem, size = 0x12000, scoped, tag = 'internal scratch']
  %s0 = inlined_call_operand.hbm [shape: bf16[8,16], index: 0, kind: input, shape index: {}]
  %s1 = inlined_call_operand.hbm [shape: bf16[296,128], index: 1, kind: input, shape index: {}]
  %s2 = inlined_call_operand.vmem [shape: f32[8,2], index: 2, kind: output, shape index: {}]
  %s3 = sld [smem:[#allocation0]]
  $region26: #{tpu_custom_call.1} parent=0
    _
  %s5 = ssub.s32 1, %s3
  %s6 = scalar_select 0, %s5, %s3
  $region1: #{tpu_custom_call.1} parent=0
    #allocation2 [shape = 'u8[2048]{0}', space=vmem, size = 0x800, scoped, tag = 'input window, operand 0, single buffered']
    #allocation3 [shape = 's32[1]{0}', space=sflag, size = 0x4, scoped, tag = 'scoped memory for tpu_custom_call.1']
    #allocation4 [shape = 'u8[75776]{0}', space=vmem, size = 0x12800, scoped, tag = 'input window, operand 1, single buffered']
    #allocation5 [shape = 's32[1]{0}', space=sflag, size = 0x4, scoped, tag = 'scoped memory for tpu_custom_call.1']
    %7 = vsyncpa [#allocation3], 0
    %8 = vsyncpa [#allocation5], 0
    // Predicated region
    $region2: #{tpu_custom_call.1} parent=1 // pred_check
      _
    $region3: #{tpu_custom_call.1} parent=1 // pred_check_branch
      %10 = sbr.rel (0) target = $region5
    $region4: #{tpu_custom_call.1} parent=1 // pred_region
      %s12 = ssub.s32 64, 64
      %13 = vsyncadd [#allocation3], %s12
      %s15 = sshll.u32 [#allocation2], 4
      %s16 = int_to_ptr.vmem [resolvable:$true] %s15
      %18 = dma.hbm_to_vmem [thread:$0]  %s0, 64, %s16, [#allocation3]
    $region5: #{tpu_custom_call.1} parent=1 // pred_fallthru
      _
    // Predicated region
    $region6: #{tpu_custom_call.1} parent=1 // pred_check
      _
    $region7: #{tpu_custom_call.1} parent=1 // pred_check_branch
      %20 = sbr.rel (0) target = $region9
    $region8: #{tpu_custom_call.1} parent=1 // pred_region
      %s22 = ssub.s32 2368, 2368
      %23 = vsyncadd [#allocation5], %s22
      %s24 = sshll.u32 [#allocation4], 4
      %s25 = int_to_ptr.vmem [resolvable:$true] %s24
      %30 = dma.hbm_to_vmem [thread:$0]  %s1, 2368, %s25, [#allocation5], 64, 64, 4
    $region9: #{tpu_custom_call.1} parent=1 // pred_fallthru
      _
    // Predicated region
    $region10: #{tpu_custom_call.1} parent=1 // pred_check
      _
    $region11: #{tpu_custom_call.1} parent=1 // pred_check_branch
      %32 = sbr.rel (0) target = $region13
    $region12: #{tpu_custom_call.1} parent=1 // pred_region
      %33 = dma.done [#allocation3], 64
    $region13: #{tpu_custom_call.1} parent=1 // pred_fallthru
      _
    // Predicated region
    $region14: #{tpu_custom_call.1} parent=1 // pred_check
      _
    $region15: #{tpu_custom_call.1} parent=1 // pred_check_branch
      %35 = sbr.rel (0) target = $region17
    $region16: #{tpu_custom_call.1} parent=1 // pred_region
      %36 = dma.done [#allocation5], 2368
    $region17: #{tpu_custom_call.1} parent=1 // pred_fallthru
      _
    %v38 = vld [vmem:[#allocation2] sm:$0xf]
    %v39 = vld [vmem:[#allocation4] sm:$0xf]
    %v40 = vld [vmem:[#allocation4 + $0x4] sm:$0xf]
    %v41 = vld [vmem:[#allocation4 + $0x8] sm:$0x1]
    %v42 = vunpack.c.l.bf16 %v41
    %v43 = vlaneseq
    %v44 = vshrl.u32 %v43, 7
    %v45 = vsub.s32 0, %v44
    %v46 = vrot.slane %v42, %v45
    %v49 = vunpack.c.l.b16 %v39
    %v50 = vunpack.c.l.b16 %v40
    %v51 = vpack.c.b16 %v50, %v49
    %vm53 = vcmask 130048
    %v55 = vsel %vm53, %v38, 0
    %57 = vmatprep.subr.bf16.mxu0 0
    %58 = vmatpush1.bf16.msra.mxu0 %v51
    %59 = vmatprep.subr.bf16.mxu0 0
    %60 = vmatpush1.bf16.msra.mxu0 0
    %61 = vmatprep.subr.bf16.mxu0 0
    %62 = vmatpush1.bf16.msra.mxu0 0
    %63 = vmatprep.subr.bf16.mxu0 0
    %64 = vmatpush1.bf16.msra.mxu0 0
    %65 = vmatprep.subr.bf16.mxu0 0
    %66 = vmatpush1.bf16.msra.mxu0 0
    %67 = vmatprep.subr.bf16.mxu0 0
    %68 = vmatpush1.bf16.msra.mxu0 0
    %69 = vmatprep.subr.bf16.mxu0 0
    %70 = vmatpush1.bf16.msra.mxu0 0
    %71 = vmatprep.subr.bf16.mxu0 0
    %72 = vmatpush1.bf16.msra.mxu0 0
    %73 = vmatprep.subr.bf16.mxu0 0
    %74 = vmatpush1.bf16.msra.mxu0 0
    %75 = vmatprep.subr.bf16.mxu0 0
    %76 = vmatpush1.bf16.msra.mxu0 0
    %77 = vmatprep.subr.bf16.mxu0 0
    %78 = vmatpush1.bf16.msra.mxu0 0
    %79 = vmatprep.subr.bf16.mxu0 0
    %80 = vmatpush1.bf16.msra.mxu0 0
    %81 = vmatprep.subr.bf16.mxu0 0
    %82 = vmatpush1.bf16.msra.mxu0 0
    %83 = vmatprep.subr.bf16.mxu0 0
    %84 = vmatpush1.bf16.msra.mxu0 0
    %85 = vmatprep.subr.bf16.mxu0 0
    %86 = vmatpush1.bf16.msra.mxu0 0
    %87 = vmatprep.subr.bf16.mxu0 0
    %88 = vmatpush1.bf16.msra.mxu0 0
    %89 = vmatprep.mubr.bf16.mxu0 0
    %90 = vmatmul.mubr.bf16.gmra.mrb[0].mxu0 %v55
    %v91 = vpop.f32.mrb[0].mxu0
    %v92 = vadd.f32 %v46, %v91
    %v93 = vpop.f32.mrb[0].mxu0
    %v94 = vpop.f32.mrb[0].mxu0
    %v95 = vpop.f32.mrb[0].mxu0
    %96 = vdwg.mxu0
    %v97 = vmax.f32 %v92, 0.0
    %v98 = vpack.c.bf16 %v97, %v97
    %v99 = vld [vmem:[#allocation4 + $0xc] sm:$0xf]
    %v100 = vld [vmem:[#allocation4 + $0x10] sm:$0xf]
    %v101 = vld [vmem:[#allocation4 + $0x14] sm:$0xf]
    %v102 = vld [vmem:[#allocation4 + $0x18] sm:$0xf]
    %v103 = vld [vmem:[#allocation4 + $0x1c] sm:$0xf]
    %v104 = vld [vmem:[#allocation4 + $0x20] sm:$0xf]
    %v105 = vld [vmem:[#allocation4 + $0x24] sm:$0xf]
    %v106 = vld [vmem:[#allocation4 + $0x28] sm:$0xf]
    %v107 = vld [vmem:[#allocation4 + $0x2c] sm:$0xf]
    %v108 = vld [vmem:[#allocation4 + $0x30] sm:$0xf]
    %v109 = vld [vmem:[#allocation4 + $0x34] sm:$0xf]
    %v110 = vld [vmem:[#allocation4 + $0x38] sm:$0xf]
    %v111 = vld [vmem:[#allocation4 + $0x3c] sm:$0xf]
    %v112 = vld [vmem:[#allocation4 + $0x40] sm:$0xf]
    %v113 = vld [vmem:[#allocation4 + $0x44] sm:$0xf]
    %v114 = vld [vmem:[#allocation4 + $0x48] sm:$0xf]
    %v115 = vld [vmem:[#allocation4 + $0x4c] sm:$0x1]
    %v116 = vunpack.c.l.bf16 %v115
    %v117 = vlaneseq
    %v118 = vshrl.u32 %v117, 7
    %v119 = vsub.s32 0, %v118
    %v120 = vrot.slane %v116, %v119
    %v137 = vunpack.c.l.b16 %v99
    %v138 = vunpack.c.l.b16 %v100
    %v139 = vunpack.c.l.b16 %v101
    %v140 = vunpack.c.l.b16 %v102
    %v141 = vunpack.c.l.b16 %v103
    %v142 = vunpack.c.l.b16 %v104
    %v143 = vunpack.c.l.b16 %v105
    %v144 = vunpack.c.l.b16 %v106
    %v145 = vunpack.c.l.b16 %v107
    %v146 = vunpack.c.l.b16 %v108
    %v147 = vunpack.c.l.b16 %v109
    %v148 = vunpack.c.l.b16 %v110
    %v149 = vunpack.c.l.b16 %v111
    %v150 = vunpack.c.l.b16 %v112
    %v151 = vunpack.c.l.b16 %v113
    %v152 = vunpack.c.l.b16 %v114
    %v153 = vpack.c.b16 %v138, %v137
    %v154 = vpack.c.b16 %v140, %v139
    %v155 = vpack.c.b16 %v142, %v141
    %v156 = vpack.c.b16 %v144, %v143
    %v157 = vpack.c.b16 %v146, %v145
    %v158 = vpack.c.b16 %v148, %v147
    %v159 = vpack.c.b16 %v150, %v149
    %v160 = vpack.c.b16 %v152, %v151
    %169 = vmatprep.subr.bf16.mxu0 0
    %170 = vmatpush1.bf16.msra.mxu0 %v153
    %171 = vmatprep.subr.bf16.mxu0 0
    %172 = vmatpush1.bf16.msra.mxu0 %v154
    %173 = vmatprep.subr.bf16.mxu0 0
    %174 = vmatpush1.bf16.msra.mxu0 %v155
    %175 = vmatprep.subr.bf16.mxu0 0
    %176 = vmatpush1.bf16.msra.mxu0 %v156
    %177 = vmatprep.subr.bf16.mxu0 0
    %178 = vmatpush1.bf16.msra.mxu0 %v157
    %179 = vmatprep.subr.bf16.mxu0 0
    %180 = vmatpush1.bf16.msra.mxu0 %v158
    %181 = vmatprep.subr.bf16.mxu0 0
    %182 = vmatpush1.bf16.msra.mxu0 %v159
    %183 = vmatprep.subr.bf16.mxu0 0
    %184 = vmatpush1.bf16.msra.mxu0 %v160
    %185 = vmatprep.subr.bf16.mxu0 0
    %186 = vmatpush1.bf16.msra.mxu0 0
    %187 = vmatprep.subr.bf16.mxu0 0
    %188 = vmatpush1.bf16.msra.mxu0 0
    %189 = vmatprep.subr.bf16.mxu0 0
    %190 = vmatpush1.bf16.msra.mxu0 0
    %191 = vmatprep.subr.bf16.mxu0 0
    %192 = vmatpush1.bf16.msra.mxu0 0
    %193 = vmatprep.subr.bf16.mxu0 0
    %194 = vmatpush1.bf16.msra.mxu0 0
    %195 = vmatprep.subr.bf16.mxu0 0
    %196 = vmatpush1.bf16.msra.mxu0 0
    %197 = vmatprep.subr.bf16.mxu0 0
    %198 = vmatpush1.bf16.msra.mxu0 0
    %199 = vmatprep.subr.bf16.mxu0 0
    %200 = vmatpush1.bf16.msra.mxu0 0
    %201 = vmatprep.mubr.bf16.mxu0 0
    %202 = vmatmul.mubr.bf16.gmra.mrb[0].mxu0 %v98
    %v203 = vpop.f32.mrb[0].mxu0
    %v204 = vadd.f32 %v120, %v203
    %v205 = vpop.f32.mrb[0].mxu0
    %v206 = vpop.f32.mrb[0].mxu0
    %v207 = vpop.f32.mrb[0].mxu0
    %208 = vdwg.mxu0
    %v209 = vmax.f32 %v204, 0.0
    %v210 = vpack.c.bf16 %v209, %v209
    %v211 = vld [vmem:[#allocation4 + $0x50] sm:$0xf]
    %v212 = vld [vmem:[#allocation4 + $0x54] sm:$0xf]
    %v213 = vld [vmem:[#allocation4 + $0x58] sm:$0xf]
    %v214 = vld [vmem:[#allocation4 + $0x5c] sm:$0xf]
    %v215 = vld [vmem:[#allocation4 + $0x60] sm:$0xf]
    %v216 = vld [vmem:[#allocation4 + $0x64] sm:$0xf]
    %v217 = vld [vmem:[#allocation4 + $0x68] sm:$0xf]
    %v218 = vld [vmem:[#allocation4 + $0x6c] sm:$0xf]
    %v219 = vld [vmem:[#allocation4 + $0x70] sm:$0xf]
    %v220 = vld [vmem:[#allocation4 + $0x74] sm:$0xf]
    %v221 = vld [vmem:[#allocation4 + $0x78] sm:$0xf]
    %v222 = vld [vmem:[#allocation4 + $0x7c] sm:$0xf]
    %v223 = vld [vmem:[#allocation4 + $0x80] sm:$0xf]
    %v224 = vld [vmem:[#allocation4 + $0x84] sm:$0xf]
    %v225 = vld [vmem:[#allocation4 + $0x88] sm:$0xf]
    %v226 = vld [vmem:[#allocation4 + $0x8c] sm:$0xf]
    %v227 = vld [vmem:[#allocation4 + $0x90] sm:$0x1]
    %v228 = vunpack.c.l.bf16 %v227
    %v229 = vlaneseq
    %v230 = vshrl.u32 %v229, 7
    %v231 = vsub.s32 0, %v230
    %v232 = vrot.slane %v228, %v231
    %v249 = vunpack.c.l.b16 %v211
    %v250 = vunpack.c.l.b16 %v212
    %v251 = vunpack.c.l.b16 %v213
    %v252 = vunpack.c.l.b16 %v214
    %v253 = vunpack.c.l.b16 %v215
    %v254 = vunpack.c.l.b16 %v216
    %v255 = vunpack.c.l.b16 %v217
    %v256 = vunpack.c.l.b16 %v218
    %v257 = vunpack.c.l.b16 %v219
    %v258 = vunpack.c.l.b16 %v220
    %v259 = vunpack.c.l.b16 %v221
    %v260 = vunpack.c.l.b16 %v222
    %v261 = vunpack.c.l.b16 %v223
    %v262 = vunpack.c.l.b16 %v224
    %v263 = vunpack.c.l.b16 %v225
    %v264 = vunpack.c.l.b16 %v226
    %v265 = vpack.c.b16 %v250, %v249
    %v266 = vpack.c.b16 %v252, %v251
    %v267 = vpack.c.b16 %v254, %v253
    %v268 = vpack.c.b16 %v256, %v255
    %v269 = vpack.c.b16 %v258, %v257
    %v270 = vpack.c.b16 %v260, %v259
    %v271 = vpack.c.b16 %v262, %v261
    %v272 = vpack.c.b16 %v264, %v263
    %281 = vmatprep.subr.bf16.mxu0 0
    %282 = vmatpush1.bf16.msra.mxu0 %v265
    %283 = vmatprep.subr.bf16.mxu0 0
    %284 = vmatpush1.bf16.msra.mxu0 %v266
    %285 = vmatprep.subr.bf16.mxu0 0
    %286 = vmatpush1.bf16.msra.mxu0 %v267
    %287 = vmatprep.subr.bf16.mxu0 0
    %288 = vmatpush1.bf16.msra.mxu0 %v268
    %289 = vmatprep.subr.bf16.mxu0 0
    %290 = vmatpush1.bf16.msra.mxu0 %v269
    %291 = vmatprep.subr.bf16.mxu0 0
    %292 = vmatpush1.bf16.msra.mxu0 %v270
    %293 = vmatprep.subr.bf16.mxu0 0
    %294 = vmatpush1.bf16.msra.mxu0 %v271
    %295 = vmatprep.subr.bf16.mxu0 0
    %296 = vmatpush1.bf16.msra.mxu0 %v272
    %297 = vmatprep.subr.bf16.mxu0 0
    %298 = vmatpush1.bf16.msra.mxu0 0
    %299 = vmatprep.subr.bf16.mxu0 0
    %300 = vmatpush1.bf16.msra.mxu0 0
    %301 = vmatprep.subr.bf16.mxu0 0
    %302 = vmatpush1.bf16.msra.mxu0 0
    %303 = vmatprep.subr.bf16.mxu0 0
    %304 = vmatpush1.bf16.msra.mxu0 0
    %305 = vmatprep.subr.bf16.mxu0 0
    %306 = vmatpush1.bf16.msra.mxu0 0
    %307 = vmatprep.subr.bf16.mxu0 0
    %308 = vmatpush1.bf16.msra.mxu0 0
    %309 = vmatprep.subr.bf16.mxu0 0
    %310 = vmatpush1.bf16.msra.mxu0 0
    %311 = vmatprep.subr.bf16.mxu0 0
    %312 = vmatpush1.bf16.msra.mxu0 0
    %313 = vmatprep.mubr.bf16.mxu0 0
    %314 = vmatmul.mubr.bf16.gmra.mrb[0].mxu0 %v210
    %v315 = vpop.f32.mrb[0].mxu0
    %v316 = vadd.f32 %v232, %v315
    %v317 = vpop.f32.mrb[0].mxu0
    %v318 = vpop.f32.mrb[0].mxu0
    %v319 = vpop.f32.mrb[0].mxu0
    %320 = vdwg.mxu0
    %322 = vrot.lane.b32.xlu0 %v316, 127
    %v323 = vpop.permute.xlu0 %322
    %v325 = vmax.f32 %v316, %v323
    %v326 = vsub.f32 %v316, %v325
    %v327 = vmul.f32 %v326, 1.442695
    %v328 = vpow.pop %v327
    %330 = vrot.lane.b32.xlu0 %v325, 1
    %v331 = vpop.permute.xlu0 %330
    %v333 = vsub.f32 %v316, %v331
    %v334 = vmul.f32 %v333, 1.442695
    %v335 = vpow.pop %v334
    %337 = vrot.lane.b32.xlu0 %v335, 127
    %v338 = vpop.permute.xlu0 %337
    %v340 = vadd.f32 %v328, %v338
    %v341 = vrcp.pop %v340
    %v342 = vmul.f32 1.0, %v341
    %v343 = vmul.f32 %v328, %v342
    %345 = vrot.lane.b32.xlu0 %v342, 1
    %v346 = vpop.permute.xlu0 %345
    %v348 = vmul.f32 %v335, %v346
    %vm349 = vcmask 7168
    %v350 = vsel %vm349, %v343, %v348
    %vm351 = vcmask 15360
    %352 = vst.msk [vmem:[%s2] sm:$0xff] %vm351, %v350
    // Predicated region
    $region18: #{tpu_custom_call.1} parent=1 // pred_check
      _
    $region19: #{tpu_custom_call.1} parent=1 // pred_check_branch
      %354 = sbr.rel (0) target = $region21
    $region20: #{tpu_custom_call.1} parent=1 // pred_region
      _
    $region21: #{tpu_custom_call.1} parent=1 // pred_fallthru
      _
    // Predicated region
    $region22: #{tpu_custom_call.1} parent=1 // pred_check
      _
    $region23: #{tpu_custom_call.1} parent=1 // pred_check_branch
      %356 = sbr.rel (0) target = $region25
    $region24: #{tpu_custom_call.1} parent=1 // pred_region
      _
    $region25: #{tpu_custom_call.1} parent=1 // pred_fallthru
      _
    %357 = vsyncpa [#allocation3], 1
    %358 = vsyncpa [#allocation5], 1

</llo_original>
